<compile_context>
chip_gen: v7x
topology: tpu7x:2x2x1
jax: 0.10.0
libtpu: 0.0.40
codegen_flags: <defaults>
</compile_context>

<pallas_src>
import jax
import jax.numpy as jnp
from jax.experimental import pallas as pl
from jax.experimental.pallas import tpu as pltpu


def _round_up(n, m):
    return ((n + m - 1) // m) * m


def _erf(z):
    # Abramowitz & Stegun 7.1.26 polynomial, |error| < 1.5e-7 -> numerically
    # exact GELU while using only trivially-lowered ops (exp, mul, add, select).
    a1, a2, a3, a4, a5 = (0.254829592, -0.284496736, 1.421413741,
                          -1.453152027, 1.061405429)
    p = 0.3275911
    za = jnp.abs(z)
    t = 1.0 / (1.0 + p * za)
    poly = ((((a5 * t + a4) * t + a3) * t + a2) * t + a1) * t
    y = 1.0 - poly * jnp.exp(-za * za)
    return jnp.where(z < 0.0, -y, y)


def _gelu_exact(x):
    return 0.5 * x * (1.0 + _erf(x * 0.7071067811865476))


def _mlp_kernel(x_ref, w1_ref, b1_ref, w2_ref, b2_ref, o_ref):
    # x_ref: (TM, F_in); w1_ref: (F_in, H); b1_ref: (1, H)
    # w2_ref: (H, F_out); b2_ref: (1, F_out); o_ref: (TM, F_out)
    h = jnp.dot(x_ref[...], w1_ref[...], preferred_element_type=jnp.float32)
    h = h + b1_ref[...].astype(jnp.float32)
    h = _gelu_exact(h)
    # TODO(synk): dropout (drop > 0 in training mode) not implemented; the
    # module default drop=0.0 makes it the identity in this forward pass.
    y = jnp.dot(h.astype(w2_ref.dtype), w2_ref[...],
                preferred_element_type=jnp.float32)
    y = y + b2_ref[...].astype(jnp.float32)
    o_ref[...] = y.astype(o_ref.dtype)


def mlp_pallas(x, w1, b1, w2, b2, *, tile_rows=256):
    """MLP forward:  gelu(x @ w1 + b1) @ w2 + b2.

    x: (..., F_in); w1: (F_in, H); b1: (H,); w2: (H, F_out); b2: (F_out,).
    Weights are stored transposed w.r.t. torch's nn.Linear (out, in) layout so
    the kernel computes plain `x @ W`.
    """
    *lead, f_in = x.shape
    assert w1.shape[0] == f_in
    hidden = w1.shape[1]
    assert w2.shape[0] == hidden
    f_out = w2.shape[1]

    x2d = x.reshape(-1, f_in)
    n = x2d.shape[0]

    # Lane-dense padding of hidden / output feature dims (mathematically exact:
    # padded hidden columns produce GELU(0)=0 and hit zero rows of W2; padded
    # output columns are sliced away below).
    hidden_p = _round_up(hidden, 128)
    f_out_p = _round_up(f_out, 128)
    if hidden_p != hidden:
        w1 = jnp.pad(w1, ((0, 0), (0, hidden_p - hidden)))
        b1 = jnp.pad(b1, ((0, hidden_p - hidden),))
        w2 = jnp.pad(w2, ((0, hidden_p - hidden), (0, 0)))
    if f_out_p != f_out:
        w2 = jnp.pad(w2, ((0, 0), (0, f_out_p - f_out)))
        b2 = jnp.pad(b2, ((0, f_out_p - f_out),))

    # Row tiling: big tiles feed the MXU; remainder rows handled by padding.
    tm = max(8, min(tile_rows, _round_up(n, 8)))
    n_p = _round_up(n, tm)
    if n_p != n:
        x2d = jnp.pad(x2d, ((0, n_p - n), (0, 0)))

    out2d = pl.pallas_call(
        _mlp_kernel,
        out_shape=jax.ShapeDtypeStruct((n_p, f_out_p), x.dtype),
        grid_spec=pltpu.PrefetchScalarGridSpec(
            num_scalar_prefetch=0,
            grid=(n_p // tm,),
            in_specs=[
                pl.BlockSpec((tm, f_in), lambda i: (i, 0)),
                pl.BlockSpec((f_in, hidden_p), lambda i: (0, 0)),
                pl.BlockSpec((1, hidden_p), lambda i: (0, 0)),
                pl.BlockSpec((hidden_p, f_out_p), lambda i: (0, 0)),
                pl.BlockSpec((1, f_out_p), lambda i: (0, 0)),
            ],
            out_specs=pl.BlockSpec((tm, f_out_p), lambda i: (i, 0)),
        ),
        compiler_params=pltpu.CompilerParams(
            dimension_semantics=("parallel",),
            vmem_limit_bytes=48 * 1024 * 1024,
        ),
    )(x2d, w1, b1.reshape(1, hidden_p), w2, b2.reshape(1, f_out_p))

    out2d = out2d[:n, :f_out]
    return out2d.reshape(*lead, f_out)


def _reference(x, w1, b1, w2, b2):
    hp = jax.lax.Precision.HIGHEST
    h = jnp.dot(x.astype(jnp.float32), w1.astype(jnp.float32), precision=hp) + b1
    h = jax.nn.gelu(h, approximate=False)  # exact erf GELU == torch nn.GELU()
    return jnp.dot(h, w2.astype(jnp.float32), precision=hp) + b2


if __name__ == "__main__":
    key = jax.random.PRNGKey(0)

    def make_case(k, lead_shape, f_in, hidden, f_out):
        k_x, k_w1, k_b1, k_w2, k_b2 = jax.random.split(k, 5)
        x = jax.random.normal(k_x, (*lead_shape, f_in), dtype=jnp.float32)
        w1 = 0.05 * jax.random.normal(k_w1, (f_in, hidden), dtype=jnp.float32)
        b1 = 0.01 * jax.random.normal(k_b1, (hidden,), dtype=jnp.float32)
        w2 = 0.05 * jax.random.normal(k_w2, (hidden, f_out), dtype=jnp.float32)
        b2 = 0.01 * jax.random.normal(k_b2, (f_out,), dtype=jnp.float32)
        return x, w1, b1, w2, b2

    k1, k2 = jax.random.split(key)

    # Case 1: small shapes implied by the module (batch=2, seq=8, in=32, hidden=64).
    args1 = make_case(k1, (2, 8), 32, 64, 32)
    out1 = jax.block_until_ready(mlp_pallas(*args1))
    ref1 = _reference(*args1)
    assert out1.shape == (2, 8, 32), out1.shape
    assert jnp.allclose(out1, ref1, atol=2e-3, rtol=2e-3), "case1 mismatch vs reference"

    # Case 2: exercises a multi-step row grid + remainder padding (N=800, TM=256).
    args2 = make_case(k2, (4, 200), 128, 256, 128)
    out2 = jax.block_until_ready(mlp_pallas(*args2))
    ref2 = _reference(*args2)
    assert out2.shape == (4, 200, 128), out2.shape
    assert jnp.allclose(out2, ref2, atol=2e-3, rtol=2e-3), "case2 mismatch vs reference"

    print("KERNEL_OK")
</pallas_src>

<mosaic_0001>
module attributes {stable_mosaic.version = 11 : i64} {
  func.func @_mlp_kernel(%arg0: i32, %arg1: memref<16x32xf32, #tpu.memory_space<vmem>>, %arg2: memref<32x128xf32, #tpu.memory_space<vmem>>, %arg3: memref<1x128xf32, #tpu.memory_space<vmem>>, %arg4: memref<128x128xf32, #tpu.memory_space<vmem>>, %arg5: memref<1x128xf32, #tpu.memory_space<vmem>>, %arg6: memref<16x128xf32, #tpu.memory_space<vmem>>) attributes {dimension_semantics = [#tpu.dimension_semantics<parallel>], iteration_bounds = array<i64: 1>, scalar_prefetch = 0 : i64, scratch_operands = 0 : i64, tpu.core_type = #tpu.core_type<tc>, window_params = [{transform_indices = @transform_0, window_bounds = array<i64: 16, 32>}, {pipeline_mode = #tpu.pipeline_mode<synchronous>, transform_indices = @transform_1, window_bounds = array<i64: 32, 128>}, {pipeline_mode = #tpu.pipeline_mode<synchronous>, transform_indices = @transform_2, window_bounds = array<i64: 1, 128>}, {pipeline_mode = #tpu.pipeline_mode<synchronous>, transform_indices = @transform_3, window_bounds = array<i64: 128, 128>}, {pipeline_mode = #tpu.pipeline_mode<synchronous>, transform_indices = @transform_4, window_bounds = array<i64: 1, 128>}, {transform_indices = @transform_5, window_bounds = array<i64: 16, 128>}]} {
    %c0 = arith.constant 0 : index
    %c0_0 = arith.constant 0 : index
    %0 = vector.load %arg1[%c0, %c0_0] : memref<16x32xf32, #tpu.memory_space<vmem>>, vector<16x32xf32>
    %c0_1 = arith.constant 0 : index
    %c0_2 = arith.constant 0 : index
    %1 = vector.load %arg2[%c0_1, %c0_2] : memref<32x128xf32, #tpu.memory_space<vmem>>, vector<32x128xf32>
    %cst = arith.constant dense<0.000000e+00> : vector<16x128xf32>
    %2 = tpu.matmul %0, %1, %cst {dimension_numbers = #tpu.dot_dimension_numbers<[1], [0], [0], [1], [0, 0, 1, 1], [], []>} : vector<16x32xf32>, vector<32x128xf32>, vector<16x128xf32> -> vector<16x128xf32>
    %c0_3 = arith.constant 0 : index
    %c0_4 = arith.constant 0 : index
    %3 = vector.load %arg3[%c0_3, %c0_4] : memref<1x128xf32, #tpu.memory_space<vmem>>, vector<1x128xf32>
    %4 = vector.broadcast %3 : vector<1x128xf32> to vector<16x128xf32>
    %5 = arith.addf %2, %4 : vector<16x128xf32>
    %cst_5 = arith.constant 5.000000e-01 : f32
    %6 = vector.broadcast %cst_5 : f32 to vector<16x128xf32>
    %7 = arith.mulf %6, %5 : vector<16x128xf32>
    %cst_6 = arith.constant 0.707106769 : f32
    %8 = vector.broadcast %cst_6 : f32 to vector<16x128xf32>
    %9 = arith.mulf %5, %8 : vector<16x128xf32>
    %10 = math.absf %9 : vector<16x128xf32>
    %cst_7 = arith.constant 0.327591091 : f32
    %11 = vector.broadcast %cst_7 : f32 to vector<16x128xf32>
    %12 = arith.mulf %11, %10 : vector<16x128xf32>
    %cst_8 = arith.constant 1.000000e+00 : f32
    %13 = vector.broadcast %cst_8 : f32 to vector<16x128xf32>
    %14 = arith.addf %13, %12 : vector<16x128xf32>
    %cst_9 = arith.constant 1.000000e+00 : f32
    %15 = vector.broadcast %cst_9 : f32 to vector<16x128xf32>
    %16 = arith.divf %15, %14 : vector<16x128xf32>
    %cst_10 = arith.constant 1.06140542 : f32
    %17 = vector.broadcast %cst_10 : f32 to vector<16x128xf32>
    %18 = arith.mulf %17, %16 : vector<16x128xf32>
    %cst_11 = arith.constant -1.45315206 : f32
    %19 = vector.broadcast %cst_11 : f32 to vector<16x128xf32>
    %20 = arith.addf %18, %19 : vector<16x128xf32>
    %21 = arith.mulf %20, %16 : vector<16x128xf32>
    %cst_12 = arith.constant 1.42141378 : f32
    %22 = vector.broadcast %cst_12 : f32 to vector<16x128xf32>
    %23 = arith.addf %21, %22 : vector<16x128xf32>
    %24 = arith.mulf %23, %16 : vector<16x128xf32>
    %cst_13 = arith.constant -0.284496725 : f32
    %25 = vector.broadcast %cst_13 : f32 to vector<16x128xf32>
    %26 = arith.addf %24, %25 : vector<16x128xf32>
    %27 = arith.mulf %26, %16 : vector<16x128xf32>
    %cst_14 = arith.constant 0.254829586 : f32
    %28 = vector.broadcast %cst_14 : f32 to vector<16x128xf32>
    %29 = arith.addf %27, %28 : vector<16x128xf32>
    %30 = arith.mulf %29, %16 : vector<16x128xf32>
    %cst_15 = arith.constant 0.000000e+00 : f32
    %31 = vector.broadcast %cst_15 : f32 to vector<16x128xf32>
    %32 = arith.subf %31, %10 : vector<16x128xf32>
    %33 = arith.mulf %32, %10 : vector<16x128xf32>
    %34 = math.exp %33 : vector<16x128xf32>
    %35 = arith.mulf %30, %34 : vector<16x128xf32>
    %cst_16 = arith.constant 1.000000e+00 : f32
    %36 = vector.broadcast %cst_16 : f32 to vector<16x128xf32>
    %37 = arith.subf %36, %35 : vector<16x128xf32>
    %cst_17 = arith.constant 0.000000e+00 : f32
    %38 = vector.broadcast %cst_17 : f32 to vector<16x128xf32>
    %39 = arith.cmpf olt, %9, %38 : vector<16x128xf32>
    %cst_18 = arith.constant 0.000000e+00 : f32
    %40 = vector.broadcast %cst_18 : f32 to vector<16x128xf32>
    %41 = arith.subf %40, %37 : vector<16x128xf32>
    %42 = arith.select %39, %41, %37 : vector<16x128xi1>, vector<16x128xf32>
    %cst_19 = arith.constant 1.000000e+00 : f32
    %43 = vector.broadcast %cst_19 : f32 to vector<16x128xf32>
    %44 = arith.addf %43, %42 : vector<16x128xf32>
    %45 = arith.mulf %7, %44 : vector<16x128xf32>
    %c0_20 = arith.constant 0 : index
    %c0_21 = arith.constant 0 : index
    %46 = vector.load %arg4[%c0_20, %c0_21] : memref<128x128xf32, #tpu.memory_space<vmem>>, vector<128x128xf32>
    %cst_22 = arith.constant dense<0.000000e+00> : vector<16x128xf32>
    %47 = tpu.matmul %45, %46, %cst_22 {dimension_numbers = #tpu.dot_dimension_numbers<[1], [0], [0], [1], [0, 0, 1, 1], [], []>} : vector<16x128xf32>, vector<128x128xf32>, vector<16x128xf32> -> vector<16x128xf32>
    %c0_23 = arith.constant 0 : index
    %c0_24 = arith.constant 0 : index
    %48 = vector.load %arg5[%c0_23, %c0_24] : memref<1x128xf32, #tpu.memory_space<vmem>>, vector<1x128xf32>
    %49 = vector.broadcast %48 : vector<1x128xf32> to vector<16x128xf32>
    %50 = arith.addf %47, %49 : vector<16x128xf32>
    %c0_25 = arith.constant 0 : index
    %c0_26 = arith.constant 0 : index
    %51 = vector.load %arg6[%c0_25, %c0_26] : memref<16x128xf32, #tpu.memory_space<vmem>>, vector<16x128xf32>
    tpu.vector_store %arg6[%c0_25, %c0_26], %50 {strides = array<i32>} : memref<16x128xf32, #tpu.memory_space<vmem>>, vector<16x128xf32>,
    return
  }
  func.func @transform_0(%arg0: i32) -> (i32, i32) {
    %c0_i32 = arith.constant 0 : i32
    %c0_i32_0 = arith.constant 0 : i32
    return %arg0, %c0_i32 : i32, i32
  }
  func.func @transform_1(%arg0: i32) -> (i32, i32) {
    %c0_i32 = arith.constant 0 : i32
    %c0_i32_0 = arith.constant 0 : i32
    %c0_i32_1 = arith.constant 0 : i32
    return %c0_i32, %c0_i32_0 : i32, i32
  }
  func.func @transform_2(%arg0: i32) -> (i32, i32) {
    %c0_i32 = arith.constant 0 : i32
    %c0_i32_0 = arith.constant 0 : i32
    %c0_i32_1 = arith.constant 0 : i32
    return %c0_i32, %c0_i32_0 : i32, i32
  }
  func.func @transform_3(%arg0: i32) -> (i32, i32) {
    %c0_i32 = arith.constant 0 : i32
    %c0_i32_0 = arith.constant 0 : i32
    %c0_i32_1 = arith.constant 0 : i32
    return %c0_i32, %c0_i32_0 : i32, i32
  }
  func.func @transform_4(%arg0: i32) -> (i32, i32) {
    %c0_i32 = arith.constant 0 : i32
    %c0_i32_0 = arith.constant 0 : i32
    %c0_i32_1 = arith.constant 0 : i32
    return %c0_i32, %c0_i32_0 : i32, i32
  }
  func.func @transform_5(%arg0: i32) -> (i32, i32) {
    %c0_i32 = arith.constant 0 : i32
    %c0_i32_0 = arith.constant 0 : i32
    return %arg0, %c0_i32 : i32, i32
  }
}

</mosaic_0001>

<llo_original>
// kernel: tpu_custom_call.1
$region0: #{tpu_custom_call.1}
  #allocation0 [shape = 'u32[]', space=smem, size = 0x4, offset = 0x4, fixed_abs, tag = 'smem constant byte address 0x4 - core index']
  #allocation1 [shape = 'u32[144,128]{1,0:T(1,128)}', space=vmem, size = 0x12000, scoped, tag = 'internal scratch']
  %s0 = inlined_call_operand.hbm [shape: f32[16,32], index: 0, kind: input, shape index: {}]
  %s1 = inlined_call_operand.hbm [shape: f32[32,128], index: 1, kind: input, shape index: {}]
  %s2 = inlined_call_operand.vmem [shape: f32[1,128], index: 2, kind: input, shape index: {}]
  %s3 = inlined_call_operand.hbm [shape: f32[128,128], index: 3, kind: input, shape index: {}]
  %s4 = inlined_call_operand.vmem [shape: f32[1,128], index: 4, kind: input, shape index: {}]
  %s5 = inlined_call_operand.hbm [shape: f32[16,128], index: 5, kind: output, shape index: {}]
  %s6 = sld [smem:[#allocation0]]
  $region42: #{tpu_custom_call.1} parent=0
    _
  %s8 = ssub.s32 1, %s6
  %s9 = scalar_select 0, %s8, %s6
  $region1: #{tpu_custom_call.1} parent=0
    #allocation2 [shape = 'u8[8192]{0}', space=vmem, size = 0x2000, scoped, tag = 'input window, operand 0, single buffered']
    #allocation3 [shape = 's32[1]{0}', space=sflag, size = 0x4, scoped, tag = 'scoped memory for tpu_custom_call.1']
    #allocation4 [shape = 's32[1]{0}', space=sflag, size = 0x4, scoped, tag = 'scoped memory for tpu_custom_call.1']
    #allocation5 [shape = 'u8[16384]{0}', space=vmem, size = 0x4000, scoped, tag = 'input window, operand 1, single buffered']
    #allocation6 [shape = 's32[1]{0}', space=sflag, size = 0x4, scoped, tag = 'scoped memory for tpu_custom_call.1']
    #allocation7 [shape = 'u8[65536]{0}', space=vmem, size = 0x10000, scoped, tag = 'input window, operand 3, single buffered']
    #allocation8 [shape = 'u8[8192]{0}', space=vmem, size = 0x2000, scoped, tag = 'output window, operand 0, single buffered']
    %10 = vsyncpa [#allocation3], 0
    %11 = vsyncpa [#allocation6], 0
    %12 = vsyncpa [#allocation4], 0
    // Predicated region
    $region2: #{tpu_custom_call.1} parent=1 // pred_check
      _
    $region3: #{tpu_custom_call.1} parent=1 // pred_check_branch
      %14 = sbr.rel (0) target = $region5
    $region4: #{tpu_custom_call.1} parent=1 // pred_region
      %s16 = ssub.s32 256, 256
      %17 = vsyncadd [#allocation3], %s16
      %s18 = sshll.u32 [#allocation2], 4
      %s19 = int_to_ptr.vmem [resolvable:$true] %s18
      %24 = dma.hbm_to_vmem [thread:$0]  %s0, 256, %s19, [#allocation3], 128, 128, 8
    $region5: #{tpu_custom_call.1} parent=1 // pred_fallthru
      _
    // Predicated region
    $region6: #{tpu_custom_call.1} parent=1 // pred_check
      _
    $region7: #{tpu_custom_call.1} parent=1 // pred_check_branch
      %26 = sbr.rel (0) target = $region9
    $region8: #{tpu_custom_call.1} parent=1 // pred_region
      %s28 = ssub.s32 512, 512
      %29 = vsyncadd [#allocation6], %s28
      %s30 = sshll.u32 [#allocation5], 4
      %s31 = int_to_ptr.vmem [resolvable:$true] %s30
      %36 = dma.hbm_to_vmem [thread:$0]  %s1, 512, %s31, [#allocation6], 128, 128, 8
    $region9: #{tpu_custom_call.1} parent=1 // pred_fallthru
      _
    // Predicated region
    $region10: #{tpu_custom_call.1} parent=1 // pred_check
      _
    $region11: #{tpu_custom_call.1} parent=1 // pred_check_branch
      %38 = sbr.rel (0) target = $region13
    $region12: #{tpu_custom_call.1} parent=1 // pred_region
      _
    $region13: #{tpu_custom_call.1} parent=1 // pred_fallthru
      _
    // Predicated region
    $region14: #{tpu_custom_call.1} parent=1 // pred_check
      _
    $region15: #{tpu_custom_call.1} parent=1 // pred_check_branch
      %40 = sbr.rel (0) target = $region17
    $region16: #{tpu_custom_call.1} parent=1 // pred_region
      %s42 = ssub.s32 2048, 2048
      %43 = vsyncadd [#allocation6], %s42
      %s44 = sshll.u32 [#allocation7], 4
      %s45 = int_to_ptr.vmem [resolvable:$true] %s44
      %50 = dma.hbm_to_vmem [thread:$0]  %s3, 2048, %s45, [#allocation6], 128, 128, 8
    $region17: #{tpu_custom_call.1} parent=1 // pred_fallthru
      _
    // Predicated region
    $region18: #{tpu_custom_call.1} parent=1 // pred_check
      _
    $region19: #{tpu_custom_call.1} parent=1 // pred_check_branch
      %52 = sbr.rel (0) target = $region21
    $region20: #{tpu_custom_call.1} parent=1 // pred_region
      _
    $region21: #{tpu_custom_call.1} parent=1 // pred_fallthru
      _
    // Predicated region
    $region22: #{tpu_custom_call.1} parent=1 // pred_check
      _
    $region23: #{tpu_custom_call.1} parent=1 // pred_check_branch
      %54 = sbr.rel (0) target = $region25
    $region24: #{tpu_custom_call.1} parent=1 // pred_region
      %55 = dma.done [#allocation3], 256
    $region25: #{tpu_custom_call.1} parent=1 // pred_fallthru
      _
    // Predicated region
    $region26: #{tpu_custom_call.1} parent=1 // pred_check
      _
    $region27: #{tpu_custom_call.1} parent=1 // pred_check_branch
      %57 = sbr.rel (0) target = $region29
    $region28: #{tpu_custom_call.1} parent=1 // pred_region
      %58 = dma.done [#allocation6], 512
    $region29: #{tpu_custom_call.1} parent=1 // pred_fallthru
      _
    // Predicated region
    $region30: #{tpu_custom_call.1} parent=1 // pred_check
      _
    $region31: #{tpu_custom_call.1} parent=1 // pred_check_branch
      %60 = sbr.rel (0) target = $region33
    $region32: #{tpu_custom_call.1} parent=1 // pred_region
      %61 = dma.done [#allocation6], 2048
    $region33: #{tpu_custom_call.1} parent=1 // pred_fallthru
      _
    %v62 = vld [vmem:[#allocation2] sm:$0xff]
    %v63 = vld [vmem:[#allocation2 + $0x8] sm:$0xff]
    %v64 = vld [vmem:[#allocation5] sm:$0xff]
    %v65 = vld [vmem:[#allocation5 + $0x8] sm:$0xff]
    %v66 = vld [vmem:[#allocation5 + $0x10] sm:$0xff]
    %v67 = vld [vmem:[#allocation5 + $0x18] sm:$0xff]
    %v68 = vld [vmem:[%s2] sm:$0x1]
    %v70 = vlaneseq
    %v71 = vshrl.u32 %v70, 7
    %v72 = vsub.s32 0, %v71
    %v73 = vrot.slane %v68, %v72
    %vm75 = vcmask 261120
    %v77 = vsel %vm75, %v62, 0
    %v80 = vsel %vm75, %v63, 0
    %82 = vmatprep.subr.mxu0 0.0
    %83 = vmatpush1.msra.mxu0 %v64
    %84 = vmatprep.subr.mxu0 0.0
    %85 = vmatpush1.msra.mxu0 %v65
    %86 = vmatprep.subr.mxu0 0.0
    %87 = vmatpush1.msra.mxu0 %v66
    %88 = vmatprep.subr.mxu0 0.0
    %89 = vmatpush1.msra.mxu0 %v67
    %90 = vmatprep.subr.mxu0 0.0
    %91 = vmatpush1.msra.mxu0 0.0
    %92 = vmatprep.subr.mxu0 0.0
    %93 = vmatpush1.msra.mxu0 0.0
    %94 = vmatprep.subr.mxu0 0.0
    %95 = vmatpush1.msra.mxu0 0.0
    %96 = vmatprep.subr.mxu0 0.0
    %97 = vmatpush1.msra.mxu0 0.0
    %98 = vmatprep.subr.mxu0 0.0
    %99 = vmatpush1.msra.mxu0 0.0
    %100 = vmatprep.subr.mxu0 0.0
    %101 = vmatpush1.msra.mxu0 0.0
    %102 = vmatprep.subr.mxu0 0.0
    %103 = vmatpush1.msra.mxu0 0.0
    %104 = vmatprep.subr.mxu0 0.0
    %105 = vmatpush1.msra.mxu0 0.0
    %106 = vmatprep.subr.mxu0 0.0
    %107 = vmatpush1.msra.mxu0 0.0
    %108 = vmatprep.subr.mxu0 0.0
    %109 = vmatpush1.msra.mxu0 0.0
    %110 = vmatprep.subr.mxu0 0.0
    %111 = vmatpush1.msra.mxu0 0.0
    %112 = vmatprep.subr.mxu0 0.0
    %113 = vmatpush1.msra.mxu0 0.0
    %114 = vmatprep.subr.mxu0 0.0
    %115 = vmatpush1.msra.mxu0 0.0
    %116 = vmatprep.subr.mxu0 0.0
    %117 = vmatpush1.msra.mxu0 0.0
    %118 = vmatprep.subr.mxu0 0.0
    %119 = vmatpush1.msra.mxu0 0.0
    %120 = vmatprep.subr.mxu0 0.0
    %121 = vmatpush1.msra.mxu0 0.0
    %122 = vmatprep.subr.mxu0 0.0
    %123 = vmatpush1.msra.mxu0 0.0
    %124 = vmatprep.subr.mxu0 0.0
    %125 = vmatpush1.msra.mxu0 0.0
    %126 = vmatprep.subr.mxu0 0.0
    %127 = vmatpush1.msra.mxu0 0.0
    %128 = vmatprep.subr.mxu0 0.0
    %129 = vmatpush1.msra.mxu0 0.0
    %130 = vmatprep.subr.mxu0 0.0
    %131 = vmatpush1.msra.mxu0 0.0
    %132 = vmatprep.subr.mxu0 0.0
    %133 = vmatpush1.msra.mxu0 0.0
    %134 = vmatprep.subr.mxu0 0.0
    %135 = vmatpush1.msra.mxu0 0.0
    %136 = vmatprep.subr.mxu0 0.0
    %137 = vmatpush1.msra.mxu0 0.0
    %138 = vmatprep.subr.mxu0 0.0
    %139 = vmatpush1.msra.mxu0 0.0
    %140 = vmatprep.subr.mxu0 0.0
    %141 = vmatpush1.msra.mxu0 0.0
    %142 = vmatprep.subr.mxu0 0.0
    %143 = vmatpush1.msra.mxu0 0.0
    %144 = vmatprep.subr.mxu0 0.0
    %145 = vmatpush1.msra.mxu0 0.0
    %146 = vmatprep.mubr.f32.mxu0 0.0
    %147 = vmatmul.mubr.f32.gmra.mrb[0].mxu0 %v77
    %v148 = vpop.f32.mrb[0].mxu0
    %v149 = vadd.f32 %v73, %v148
    %v150 = vpop.f32.mrb[0].mxu0
    %151 = vmatprep.mubr.f32.mxu0 0.0
    %152 = vmatmul.mubr.f32.gmra.mrb[0].mxu0 %v80
    %v153 = vpop.f32.mrb[0].mxu0
    %v154 = vadd.f32 %v73, %v153
    %v155 = vpop.f32.mrb[0].mxu0
    %156 = vdwg.mxu0
    %v157 = vmul.f32 %v149, 0.5
    %v158 = vmul.f32 %v154, 0.5
    %v159 = vmul.f32 %v149, 0.70710677
    %v160 = vmul.f32 %v154, 0.70710677
    %v161 = vand.u32 2147483647, %v159
    %v162 = vand.u32 2147483647, %v160
    %v163 = vmul.f32 %v161, 0.3275911
    %v164 = vmul.f32 %v162, 0.3275911
    %v165 = vadd.f32 %v163, 1.0
    %v166 = vadd.f32 %v164, 1.0
    %v167 = vrcp.pop %v165
    %v168 = vmul.f32 1.0, %v167
    %v169 = vrcp.pop %v166
    %v170 = vmul.f32 1.0, %v169
    %v171 = vmul.f32 %v168, 1.0614054
    %v172 = vmul.f32 %v170, 1.0614054
    %v173 = vadd.f32 %v171, -1.4531521
    %v174 = vadd.f32 %v172, -1.4531521
    %v175 = vmul.f32 %v173, %v168
    %v176 = vmul.f32 %v174, %v170
    %v177 = vadd.f32 %v175, 1.4214138
    %v178 = vadd.f32 %v176, 1.4214138
    %v179 = vmul.f32 %v177, %v168
    %v180 = vmul.f32 %v178, %v170
    %v181 = vadd.f32 %v179, -0.28449672
    %v182 = vadd.f32 %v180, -0.28449672
    %v183 = vmul.f32 %v181, %v168
    %v184 = vmul.f32 %v182, %v170
    %v185 = vadd.f32 %v183, 0.2548296
    %v186 = vadd.f32 %v184, 0.2548296
    %v187 = vmul.f32 %v185, %v168
    %v188 = vmul.f32 %v186, %v170
    %v189 = vsub.f32 0.0, %v161
    %v190 = vsub.f32 0.0, %v162
    %v191 = vmul.f32 %v189, %v161
    %v192 = vmul.f32 %v190, %v162
    %v193 = vmul.f32 %v191, 1.442695
    %v194 = vpow.pop %v193
    %v195 = vmul.f32 %v192, 1.442695
    %v196 = vpow.pop %v195
    %v197 = vmul.f32 %v187, %v194
    %v198 = vmul.f32 %v188, %v196
    %v199 = vsub.f32 1.0, %v197
    %v200 = vsub.f32 1.0, %v198
    %vm201 = vcmp.lt.f32.partialorder %v159, 0.0
    %vm202 = vcmp.lt.f32.partialorder %v160, 0.0
    %v203 = vsub.f32 0.0, %v199
    %v204 = vsub.f32 0.0, %v200
    %v205 = vsel %vm201, %v203, %v199
    %v206 = vsel %vm202, %v204, %v200
    %v207 = vadd.f32 %v205, 1.0
    %v208 = vadd.f32 %v206, 1.0
    %v209 = vmul.f32 %v157, %v207
    %v210 = vmul.f32 %v158, %v208
    %v211 = vld [vmem:[#allocation7] sm:$0xff]
    %v212 = vld [vmem:[#allocation7 + $0x8] sm:$0xff]
    %v213 = vld [vmem:[#allocation7 + $0x10] sm:$0xff]
    %v214 = vld [vmem:[#allocation7 + $0x18] sm:$0xff]
    %v215 = vld [vmem:[#allocation7 + $0x20] sm:$0xff]
    %v216 = vld [vmem:[#allocation7 + $0x28] sm:$0xff]
    %v217 = vld [vmem:[#allocation7 + $0x30] sm:$0xff]
    %v218 = vld [vmem:[#allocation7 + $0x38] sm:$0xff]
    %v219 = vld [vmem:[#allocation7 + $0x40] sm:$0xff]
    %v220 = vld [vmem:[#allocation7 + $0x48] sm:$0xff]
    %v221 = vld [vmem:[#allocation7 + $0x50] sm:$0xff]
    %v222 = vld [vmem:[#allocation7 + $0x58] sm:$0xff]
    %v223 = vld [vmem:[#allocation7 + $0x60] sm:$0xff]
    %v224 = vld [vmem:[#allocation7 + $0x68] sm:$0xff]
    %v225 = vld [vmem:[#allocation7 + $0x70] sm:$0xff]
    %v226 = vld [vmem:[#allocation7 + $0x78] sm:$0xff]
    %v227 = vld [vmem:[%s4] sm:$0x1]
    %v229 = vlaneseq
    %v230 = vshrl.u32 %v229, 7
    %v231 = vsub.s32 0, %v230
    %v232 = vrot.slane %v227, %v231
    %234 = vmatprep.subr.mxu0 0.0
    %235 = vmatpush1.msra.mxu0 %v211
    %236 = vmatprep.subr.mxu0 0.0
    %237 = vmatpush1.msra.mxu0 %v212
    %238 = vmatprep.subr.mxu0 0.0
    %239 = vmatpush1.msra.mxu0 %v213
    %240 = vmatprep.subr.mxu0 0.0
    %241 = vmatpush1.msra.mxu0 %v214
    %242 = vmatprep.subr.mxu0 0.0
    %243 = vmatpush1.msra.mxu0 %v215
    %244 = vmatprep.subr.mxu0 0.0
    %245 = vmatpush1.msra.mxu0 %v216
    %246 = vmatprep.subr.mxu0 0.0
    %247 = vmatpush1.msra.mxu0 %v217
    %248 = vmatprep.subr.mxu0 0.0
    %249 = vmatpush1.msra.mxu0 %v218
    %250 = vmatprep.subr.mxu0 0.0
    %251 = vmatpush1.msra.mxu0 %v219
    %252 = vmatprep.subr.mxu0 0.0
    %253 = vmatpush1.msra.mxu0 %v220
    %254 = vmatprep.subr.mxu0 0.0
    %255 = vmatpush1.msra.mxu0 %v221
    %256 = vmatprep.subr.mxu0 0.0
    %257 = vmatpush1.msra.mxu0 %v222
    %258 = vmatprep.subr.mxu0 0.0
    %259 = vmatpush1.msra.mxu0 %v223
    %260 = vmatprep.subr.mxu0 0.0
    %261 = vmatpush1.msra.mxu0 %v224
    %262 = vmatprep.subr.mxu0 0.0
    %263 = vmatpush1.msra.mxu0 %v225
    %264 = vmatprep.subr.mxu0 0.0
    %265 = vmatpush1.msra.mxu0 %v226
    %266 = vmatprep.subr.mxu0 0.0
    %267 = vmatpush1.msra.mxu0 0.0
    %268 = vmatprep.subr.mxu0 0.0
    %269 = vmatpush1.msra.mxu0 0.0
    %270 = vmatprep.subr.mxu0 0.0
    %271 = vmatpush1.msra.mxu0 0.0
    %272 = vmatprep.subr.mxu0 0.0
    %273 = vmatpush1.msra.mxu0 0.0
    %274 = vmatprep.subr.mxu0 0.0
    %275 = vmatpush1.msra.mxu0 0.0
    %276 = vmatprep.subr.mxu0 0.0
    %277 = vmatpush1.msra.mxu0 0.0
    %278 = vmatprep.subr.mxu0 0.0
    %279 = vmatpush1.msra.mxu0 0.0
    %280 = vmatprep.subr.mxu0 0.0
    %281 = vmatpush1.msra.mxu0 0.0
    %282 = vmatprep.subr.mxu0 0.0
    %283 = vmatpush1.msra.mxu0 0.0
    %284 = vmatprep.subr.mxu0 0.0
    %285 = vmatpush1.msra.mxu0 0.0
    %286 = vmatprep.subr.mxu0 0.0
    %287 = vmatpush1.msra.mxu0 0.0
    %288 = vmatprep.subr.mxu0 0.0
    %289 = vmatpush1.msra.mxu0 0.0
    %290 = vmatprep.subr.mxu0 0.0
    %291 = vmatpush1.msra.mxu0 0.0
    %292 = vmatprep.subr.mxu0 0.0
    %293 = vmatpush1.msra.mxu0 0.0
    %294 = vmatprep.subr.mxu0 0.0
    %295 = vmatpush1.msra.mxu0 0.0
    %296 = vmatprep.subr.mxu0 0.0
    %297 = vmatpush1.msra.mxu0 0.0
    %298 = vmatprep.mubr.f32.mxu0 0.0
    %299 = vmatmul.mubr.f32.gmra.mrb[0].mxu0 %v209
    %v300 = vpop.f32.mrb[0].mxu0
    %v301 = vadd.f32 %v232, %v300
    %v302 = vpop.f32.mrb[0].mxu0
    %303 = vmatprep.mubr.f32.mxu0 0.0
    %304 = vmatmul.mubr.f32.gmra.mrb[0].mxu0 %v210
    %v305 = vpop.f32.mrb[0].mxu0
    %v306 = vadd.f32 %v232, %v305
    %v307 = vpop.f32.mrb[0].mxu0
    %308 = vdwg.mxu0
    %309 = vst [vmem:[#allocation8] sm:$0xff] %v301
    %310 = vst [vmem:[#allocation8 + $0x8] sm:$0xff] %v306
    // Predicated region
    $region34: #{tpu_custom_call.1} parent=1 // pred_check
      _
    $region35: #{tpu_custom_call.1} parent=1 // pred_check_branch
      %312 = sbr.rel (0) target = $region37
    $region36: #{tpu_custom_call.1} parent=1 // pred_region
      %s314 = ssub.s32 256, 256
      %315 = vsyncadd [#allocation4], %s314
      %s316 = sshll.u32 [#allocation8], 4
      %s317 = int_to_ptr.vmem [resolvable:$true] %s316
      %322 = dma.vmem_to_hbm [thread:$0]  %s317, 256, %s5, [#allocation4], 128, 128, 8
    $region37: #{tpu_custom_call.1} parent=1 // pred_fallthru
      _
    // Predicated region
    $region38: #{tpu_custom_call.1} parent=1 // pred_check
      _
    $region39: #{tpu_custom_call.1} parent=1 // pred_check_branch
      %324 = sbr.rel (0) target = $region41
    $region40: #{tpu_custom_call.1} parent=1 // pred_region
      %325 = dma.done [#allocation4], 256
    $region41: #{tpu_custom_call.1} parent=1 // pred_fallthru
      _
    %326 = vsyncpa [#allocation3], 1
    %327 = vsyncpa [#allocation6], 1
    %328 = vsyncpa [#allocation4], 1

</llo_original>
